<compile_context>
chip_gen: v6e
topology: v6e:2x2x1
jax: 0.10.0
libtpu: 0.0.40
codegen_flags: <defaults>
</compile_context>

<pallas_src>
import math

import jax
import jax.numpy as jnp
from jax.experimental import pallas as pl
from jax.experimental.pallas import tpu as pltpu

C_IN = 32
C_OUT = 6  # 1 score + 4 loc + 1 angle (fused weight matrix)


def _detector_kernel(x_ref, w_ref, b_ref, scale_ref, shift_ref,
                     score_ref, geom_ref):
    # x_ref: (32, tm) channels-on-sublane, pixels-on-lane.
    # w_ref: (6, 32), b/scale/shift: (6, 1) broadcast over lanes.
    x = x_ref[...].astype(jnp.float32)     # in-VMEM upcast only (HBM read stays narrow)
    w = w_ref[...]                         # (6, 32) f32

    # Fused 1x1-conv for all three heads: one small MXU matmul, f32 accumulate.
    y = jnp.dot(w, x, preferred_element_type=jnp.float32) + b_ref[...]   # (6, tm)

    # sigmoid -> single broadcast affine (scale/shift per output channel).
    out = jax.nn.sigmoid(y) * scale_ref[...] + shift_ref[...]            # (6, tm)

    score_ref[...] = out[0:1, :].astype(score_ref.dtype)   # (1, tm)
    geom_ref[...] = out[1:6, :].astype(geom_ref.dtype)     # (5, tm)


def detector_pallas(x_nchw, w_score, b_score, w_loc, b_loc, w_angle, b_angle,
                    *, tm=4096):
    """Runs the FOTS Detector head.

    Args:
      x_nchw: (N, 32, H, W) shared features (f32 or bf16).
      w_*: 1x1 conv weights, PyTorch layout (C_out, C_in, 1, 1); b_*: (C_out,).
    Returns:
      (score, geometry) with shapes (N, 1, H, W), (N, 5, H, W).
    """
    N, C, H, W = x_nchw.shape
    assert C == C_IN
    HW = H * W

    # Fuse the three 1x1 convs into one (6, 32) weight and (6, 1) bias.
    # Row order: [score, loc0..loc3, angle].
    w_all = jnp.concatenate(
        [w_score.reshape(1, C_IN), w_loc.reshape(4, C_IN), w_angle.reshape(1, C_IN)],
        axis=0,
    ).astype(jnp.float32)                                              # (6, 32)
    b_all = jnp.concatenate([b_score, b_loc, b_angle]).reshape(C_OUT, 1).astype(jnp.float32)
    scale = jnp.array([1.0, 512.0, 512.0, 512.0, 512.0, math.pi / 2.0],
                      dtype=jnp.float32).reshape(C_OUT, 1)
    shift = jnp.array([0.0, 0.0, 0.0, 0.0, 0.0, -math.pi / 4.0],
                      dtype=jnp.float32).reshape(C_OUT, 1)

    # NCHW -> (N, 32, HW) is a free view; no transpose, no dtype cast.
    x3 = x_nchw.reshape(N, C_IN, HW)

    # Lane tile: multiple of 128, capped at the (128-rounded) spatial extent.
    tm = max(128, (tm // 128) * 128)
    tm = min(tm, pl.cdiv(HW, 128) * 128)
    HW_pad = pl.cdiv(HW, tm) * tm
    if HW_pad != HW:
        x3 = jnp.pad(x3, ((0, 0), (0, 0), (0, HW_pad - HW)))

    grid = (N, HW_pad // tm)
    out_dtype = x_nchw.dtype

    score3, geom3 = pl.pallas_call(
        _detector_kernel,
        out_shape=(
            jax.ShapeDtypeStruct((N, 1, HW_pad), out_dtype),
            jax.ShapeDtypeStruct((N, 5, HW_pad), out_dtype),
        ),
        grid_spec=pltpu.PrefetchScalarGridSpec(
            num_scalar_prefetch=0,
            grid=grid,
            in_specs=[
                pl.BlockSpec((pl.Squeezed(), C_IN, tm), lambda n, i: (n, 0, i)),
                pl.BlockSpec((C_OUT, C_IN), lambda n, i: (0, 0)),
                pl.BlockSpec((C_OUT, 1), lambda n, i: (0, 0)),
                pl.BlockSpec((C_OUT, 1), lambda n, i: (0, 0)),
                pl.BlockSpec((C_OUT, 1), lambda n, i: (0, 0)),
            ],
            out_specs=[
                pl.BlockSpec((pl.Squeezed(), 1, tm), lambda n, i: (n, 0, i)),
                pl.BlockSpec((pl.Squeezed(), 5, tm), lambda n, i: (n, 0, i)),
            ],
        ),
        compiler_params=pltpu.CompilerParams(
            dimension_semantics=("parallel", "parallel"),
        ),
    )(x3, w_all, b_all, scale, shift)

    # Strip spatial padding (if any) and reshape -- no transposes needed.
    score = score3[:, :, :HW].reshape(N, 1, H, W)
    geometry = geom3[:, :, :HW].reshape(N, 5, H, W)
    return score, geometry


def _reference(x_nchw, w_score, b_score, w_loc, b_loc, w_angle, b_angle):
    """Plain-JAX reference matching the PyTorch forward exactly."""
    def conv1x1(x, w, b):
        # x: (N, Cin, H, W), w: (Cout, Cin, 1, 1), b: (Cout,)
        y = jnp.einsum("nchw,oc->nohw", x, w.reshape(w.shape[0], w.shape[1]))
        return y + b[None, :, None, None]

    score = jax.nn.sigmoid(conv1x1(x_nchw, w_score, b_score))
    loc = jax.nn.sigmoid(conv1x1(x_nchw, w_loc, b_loc)) * 512.0
    angle = (jax.nn.sigmoid(conv1x1(x_nchw, w_angle, b_angle)) - 0.5) * math.pi / 2.0
    geometry = jnp.concatenate([loc, angle], axis=1)
    return score, geometry


if __name__ == "__main__":
    key = jax.random.PRNGKey(0)
    k_x, k_ws, k_bs, k_wl, k_bl, k_wa, k_ba = jax.random.split(key, 7)

    # Small deterministic shapes consistent with the module: N=2, C=32, H=W=16.
    N, H, W = 2, 16, 16
    x = jax.random.normal(k_x, (N, C_IN, H, W), dtype=jnp.float32)

    # Deterministic "Kaiming-ish" uniform init for the 1x1 convs.
    bound = 1.0 / math.sqrt(C_IN)
    w_score = jax.random.uniform(k_ws, (1, C_IN, 1, 1), minval=-bound, maxval=bound)
    b_score = jax.random.uniform(k_bs, (1,), minval=-bound, maxval=bound)
    w_loc = jax.random.uniform(k_wl, (4, C_IN, 1, 1), minval=-bound, maxval=bound)
    b_loc = jax.random.uniform(k_bl, (4,), minval=-bound, maxval=bound)
    w_angle = jax.random.uniform(k_wa, (1, C_IN, 1, 1), minval=-bound, maxval=bound)
    b_angle = jax.random.uniform(k_ba, (1,), minval=-bound, maxval=bound)

    score, geometry = detector_pallas(x, w_score, b_score, w_loc, b_loc,
                                      w_angle, b_angle)
    jax.block_until_ready((score, geometry))

    # Check against pure-JAX reference.
    score_ref, geom_ref = _reference(x, w_score, b_score, w_loc, b_loc,
                                     w_angle, b_angle)
    assert score.shape == (N, 1, H, W)
    assert geometry.shape == (N, 5, H, W)
    assert jnp.allclose(score, score_ref, atol=1e-5, rtol=1e-5)
    assert jnp.allclose(geometry, geom_ref, atol=1e-3, rtol=1e-5)

    print("KERNEL_OK")
</pallas_src>

<mosaic_0001>
module attributes {stable_mosaic.version = 11 : i64} {
  func.func @_detector_kernel(%arg0: i32, %arg1: i32, %arg2: memref<1x32x256xf32, #tpu.memory_space<vmem>>, %arg3: memref<6x32xf32, #tpu.memory_space<vmem>>, %arg4: memref<6x1xf32, #tpu.memory_space<vmem>>, %arg5: memref<6x1xf32, #tpu.memory_space<vmem>>, %arg6: memref<6x1xf32, #tpu.memory_space<vmem>>, %arg7: memref<1x1x256xf32, #tpu.memory_space<vmem>>, %arg8: memref<1x5x256xf32, #tpu.memory_space<vmem>>) attributes {dimension_semantics = [#tpu.dimension_semantics<parallel>, #tpu.dimension_semantics<parallel>], iteration_bounds = array<i64: 2, 1>, scalar_prefetch = 0 : i64, scratch_operands = 0 : i64, tpu.core_type = #tpu.core_type<tc>, window_params = [{transform_indices = @transform_0, window_bounds = array<i64: 1, 32, 256>}, {pipeline_mode = #tpu.pipeline_mode<synchronous>, transform_indices = @transform_1, window_bounds = array<i64: 6, 32>}, {pipeline_mode = #tpu.pipeline_mode<synchronous>, transform_indices = @transform_2, window_bounds = array<i64: 6, 1>}, {pipeline_mode = #tpu.pipeline_mode<synchronous>, transform_indices = @transform_3, window_bounds = array<i64: 6, 1>}, {pipeline_mode = #tpu.pipeline_mode<synchronous>, transform_indices = @transform_4, window_bounds = array<i64: 6, 1>}, {transform_indices = @transform_5, window_bounds = array<i64: 1, 1, 256>}, {transform_indices = @transform_6, window_bounds = array<i64: 1, 5, 256>}]} {
    %c0 = arith.constant 0 : index
    %c0_0 = arith.constant 0 : index
    %c0_1 = arith.constant 0 : index
    %0 = vector.load %arg2[%c0, %c0_0, %c0_1] : memref<1x32x256xf32, #tpu.memory_space<vmem>>, vector<1x32x256xf32>
    %1 = vector.shape_cast %0 : vector<1x32x256xf32> to vector<32x256xf32>
    %c0_2 = arith.constant 0 : index
    %c0_3 = arith.constant 0 : index
    %2 = vector.load %arg3[%c0_2, %c0_3] : memref<6x32xf32, #tpu.memory_space<vmem>>, vector<6x32xf32>
    %cst = arith.constant dense<0.000000e+00> : vector<6x256xf32>
    %3 = tpu.matmul %2, %1, %cst {dimension_numbers = #tpu.dot_dimension_numbers<[1], [0], [0], [1], [0, 0, 1, 1], [], []>} : vector<6x32xf32>, vector<32x256xf32>, vector<6x256xf32> -> vector<6x256xf32>
    %c0_4 = arith.constant 0 : index
    %c0_5 = arith.constant 0 : index
    %4 = vector.load %arg4[%c0_4, %c0_5] : memref<6x1xf32, #tpu.memory_space<vmem>>, vector<6x1xf32>
    %5 = vector.broadcast %4 : vector<6x1xf32> to vector<6x256xf32>
    %6 = arith.addf %3, %5 : vector<6x256xf32>
    %7 = arith.negf %6 : vector<6x256xf32>
    %8 = math.exp %7 : vector<6x256xf32>
    %cst_6 = arith.constant 1.000000e+00 : f32
    %9 = vector.broadcast %cst_6 : f32 to vector<6x256xf32>
    %10 = arith.addf %9, %8 : vector<6x256xf32>
    %11 = arith.divf %9, %10 : vector<6x256xf32>
    %c0_7 = arith.constant 0 : index
    %c0_8 = arith.constant 0 : index
    %12 = vector.load %arg5[%c0_7, %c0_8] : memref<6x1xf32, #tpu.memory_space<vmem>>, vector<6x1xf32>
    %13 = vector.broadcast %12 : vector<6x1xf32> to vector<6x256xf32>
    %14 = arith.mulf %11, %13 : vector<6x256xf32>
    %c0_9 = arith.constant 0 : index
    %c0_10 = arith.constant 0 : index
    %15 = vector.load %arg6[%c0_9, %c0_10] : memref<6x1xf32, #tpu.memory_space<vmem>>, vector<6x1xf32>
    %16 = vector.broadcast %15 : vector<6x1xf32> to vector<6x256xf32>
    %17 = arith.addf %14, %16 : vector<6x256xf32>
    %18 = vector.extract_strided_slice %17 {offsets = [0, 0], sizes = [1, 256], strides = [1, 1]} : vector<6x256xf32> to vector<1x256xf32>
    %c0_11 = arith.constant 0 : index
    %c0_12 = arith.constant 0 : index
    %c0_13 = arith.constant 0 : index
    %19 = vector.load %arg7[%c0_11, %c0_12, %c0_13] : memref<1x1x256xf32, #tpu.memory_space<vmem>>, vector<1x1x256xf32>
    %20 = vector.shape_cast %19 : vector<1x1x256xf32> to vector<1x256xf32>
    %21 = vector.shape_cast %18 : vector<1x256xf32> to vector<1x1x256xf32>
    tpu.vector_store %arg7[%c0_11, %c0_12, %c0_13], %21 {strides = array<i32>} : memref<1x1x256xf32, #tpu.memory_space<vmem>>, vector<1x1x256xf32>,
    %22 = vector.extract_strided_slice %17 {offsets = [1, 0], sizes = [5, 256], strides = [1, 1]} : vector<6x256xf32> to vector<5x256xf32>
    %c0_14 = arith.constant 0 : index
    %c0_15 = arith.constant 0 : index
    %c0_16 = arith.constant 0 : index
    %23 = vector.load %arg8[%c0_14, %c0_15, %c0_16] : memref<1x5x256xf32, #tpu.memory_space<vmem>>, vector<1x5x256xf32>
    %24 = vector.shape_cast %23 : vector<1x5x256xf32> to vector<5x256xf32>
    %25 = vector.shape_cast %22 : vector<5x256xf32> to vector<1x5x256xf32>
    tpu.vector_store %arg8[%c0_14, %c0_15, %c0_16], %25 {strides = array<i32>} : memref<1x5x256xf32, #tpu.memory_space<vmem>>, vector<1x5x256xf32>,
    return
  }
  func.func @transform_0(%arg0: i32, %arg1: i32) -> (i32, i32, i32) {
    %c0_i32 = arith.constant 0 : i32
    %c0_i32_0 = arith.constant 0 : i32
    return %arg0, %c0_i32, %arg1 : i32, i32, i32
  }
  func.func @transform_1(%arg0: i32, %arg1: i32) -> (i32, i32) {
    %c0_i32 = arith.constant 0 : i32
    %c0_i32_0 = arith.constant 0 : i32
    %c0_i32_1 = arith.constant 0 : i32
    return %c0_i32, %c0_i32_0 : i32, i32
  }
  func.func @transform_2(%arg0: i32, %arg1: i32) -> (i32, i32) {
    %c0_i32 = arith.constant 0 : i32
    %c0_i32_0 = arith.constant 0 : i32
    %c0_i32_1 = arith.constant 0 : i32
    return %c0_i32, %c0_i32_0 : i32, i32
  }
  func.func @transform_3(%arg0: i32, %arg1: i32) -> (i32, i32) {
    %c0_i32 = arith.constant 0 : i32
    %c0_i32_0 = arith.constant 0 : i32
    %c0_i32_1 = arith.constant 0 : i32
    return %c0_i32, %c0_i32_0 : i32, i32
  }
  func.func @transform_4(%arg0: i32, %arg1: i32) -> (i32, i32) {
    %c0_i32 = arith.constant 0 : i32
    %c0_i32_0 = arith.constant 0 : i32
    %c0_i32_1 = arith.constant 0 : i32
    return %c0_i32, %c0_i32_0 : i32, i32
  }
  func.func @transform_5(%arg0: i32, %arg1: i32) -> (i32, i32, i32) {
    %c0_i32 = arith.constant 0 : i32
    %c0_i32_0 = arith.constant 0 : i32
    return %arg0, %c0_i32, %arg1 : i32, i32, i32
  }
  func.func @transform_6(%arg0: i32, %arg1: i32) -> (i32, i32, i32) {
    %c0_i32 = arith.constant 0 : i32
    %c0_i32_0 = arith.constant 0 : i32
    return %arg0, %c0_i32, %arg1 : i32, i32, i32
  }
}

</mosaic_0001>

<llo_original>
// kernel: tpu_custom_call.1
$region0: #{tpu_custom_call.1}
  #allocation0 [shape = 'u32[]', space=smem, size = 0x4, offset = 0x4, fixed_abs, tag = 'smem constant byte address 0x4 - core index']
  #allocation1 [shape = 'u32[144,128]{1,0:T(1,128)}', space=vmem, size = 0x12000, scoped, tag = 'internal scratch']
  %s0 = inlined_call_operand.hbm [shape: f32[2,32,256], index: 0, kind: input, shape index: {}]
  %s1 = inlined_call_operand.vmem [shape: f32[6,32], index: 1, kind: input, shape index: {}]
  %s2 = inlined_call_operand.vmem [shape: f32[6,1], index: 2, kind: input, shape index: {}]
  %s3 = inlined_call_operand.vmem [shape: f32[6,1], index: 3, kind: input, shape index: {}]
  %s4 = inlined_call_operand.vmem [shape: f32[6,1], index: 4, kind: input, shape index: {}]
  %s5 = inlined_call_operand.hbm [shape: f32[2,1,256], index: 5, kind: output, shape index: {0}]
  %s6 = inlined_call_operand.vmem [shape: f32[2,5,256], index: 6, kind: output, shape index: {1}]
  %7 = xla_tuple %s5, %s6
  %s8 = sld [smem:[#allocation0]]
  $region65: #{tpu_custom_call.1} parent=0
    _
  %s10 = ssub.s32 1, %s8
  %s11 = scalar_select 0, %s10, %s8
  $region1: #{tpu_custom_call.1} parent=0
    #allocation2 [shape = 'u8[65536]{0}', space=vmem, size = 0x10000, scoped, tag = 'input window, operand 0']
    #allocation3 [shape = 's32[2]{0}', space=sflag, size = 0x8, scoped, tag = 'scoped memory for tpu_custom_call.1']
    #allocation4 [shape = 's32[2]{0}', space=sflag, size = 0x8, scoped, tag = 'scoped memory for tpu_custom_call.1']
    #allocation5 [shape = 'u8[2048]{0}', space=vmem, size = 0x800, scoped, tag = 'output window, operand 0']
    %12 = vsyncpa [#allocation3], 0
    %s13 = scalar_lea.sflag [#allocation3], 1
    %14 = vsyncpa %s13, 0
    %15 = vsyncpa [#allocation4], 0
    %s16 = scalar_lea.sflag [#allocation4], 1
    %17 = vsyncpa %s16, 0
    loop: start=0, step=1, limit=4
    $region2: #{tpu_custom_call.1} parent=1 // loop_pre_header
      _
    $region3: #{tpu_custom_call.1} parent=1 // loop_header
      %s19 = sphi 0, %s23
      %p20 = scmp.ge.s32.totalorder %s19, 4
      %s26 = sphi 0, %s38
      %s27 = sphi 0, %s34
      %s28 = sphi 0, %s26
      %s29 = sphi 0, %s27
      %s30 = sphi 0, %s28
      %s31 = sphi 0, %s29
      %s43 = sphi 0, %s45
      %s46 = sphi 0, %s43
      %s47 = sphi 0, %s46
      %s63 = sphi 0, %s47
      %s67 = sphi 0, %s67
      %s69 = sphi 0, %s67
      %s70 = sphi 0, %s69
      %s84 = sphi 0, %s70
      %s88 = sphi 0, %s88
      %s90 = sphi 0, %s88
      %s91 = sphi 0, %s90
      %s105 = sphi 0, %s91
      %s109 = sphi 0, %s109
      %s111 = sphi 0, %s109
      %s112 = sphi 0, %s111
      %s126 = sphi 0, %s112
      %s130 = sphi 0, %s130
      %s132 = sphi 0, %s130
      %s133 = sphi 0, %s132
      %s147 = sphi 0, %s133
      %s155 = sphi 0, %s157
      %s158 = sphi 0, %s155
      %s159 = sphi 0, %s158
      %s175 = sphi 0, %s159
      %s183 = sphi 0, %s185
      %s186 = sphi 0, %s183
      %s187 = sphi 0, %s186
      %s203 = sphi 0, %s187
    $region4: #{tpu_custom_call.1} parent=1 // loop_header_branch
      %22 = sbr.rel (%p20) target = $region8
    $region5: #{tpu_custom_call.1} parent=1 // loop_body
      %s24 = ssub.s32 %s19, 1
      %s25 = ssub.s32 %s19, 2
      %s32 = sadd.s32 1, %s27
      %p33 = scmp.ge.s32.totalorder %s32, 1
      %s34 = scalar_select %p33, 0, %s32
      %s35 = sadd.s32 1, %s26
      %s36 = scalar_select %p33, %s35, %s26
      %p37 = scmp.ge.s32.totalorder %s36, 2
      %s38 = scalar_select %p37, 0, %s36
      %s39 = ssub.s32 %s26, %s38
      %s40 = ssub.s32 %s27, %s34
      %s41 = sor.u32 %s39, %s40
      %p42 = scmp.eq.s32.totalorder %s41, 0
      %s44 = sadd.s32 %s43, 1
      %s45 = scalar_select %p42, %s43, %s44
      %p48 = pneg %p42
      %p49 = scmp.eq.s32.totalorder %s19, 1
      %p50 = por %p48, %p49
      %p51 = scmp.ne.s32.totalorder %s43, %s46
      %p52 = scmp.eq.s32.totalorder %s19, 0
      %p53 = por %p51, %p52
      %p54 = scmp.ne.s32.totalorder %s43, %s46
      %p55 = scmp.eq.s32.totalorder %s24, 1
      %p56 = por %p54, %p55
      %p57 = scmp.ne.s32.totalorder %s46, %s47
      %p58 = scmp.eq.s32.totalorder %s24, 0
      %p59 = por %p57, %p58
      %p60 = scmp.ne.s32.totalorder %s46, %s47
      %p61 = scmp.eq.s32.totalorder %s25, 1
      %p62 = por %p60, %p61
      %p64 = scmp.ne.s32.totalorder %s47, %s63
      %p65 = scmp.eq.s32.totalorder %s25, 0
      %p66 = por %p64, %p65
      %s68 = sadd.s32 %s67, 1
      %p71 = scmp.eq.s32.totalorder %s19, 1
      %p72 = scmp.ne.s32.totalorder %s67, %s69
      %p73 = scmp.eq.s32.totalorder %s19, 0
      %p74 = por %p72, %p73
      %p75 = scmp.ne.s32.totalorder %s67, %s69
      %p76 = scmp.eq.s32.totalorder %s24, 1
      %p77 = por %p75, %p76
      %p78 = scmp.ne.s32.totalorder %s69, %s70
      %p79 = scmp.eq.s32.totalorder %s24, 0
      %p80 = por %p78, %p79
      %p81 = scmp.ne.s32.totalorder %s69, %s70
      %p82 = scmp.eq.s32.totalorder %s25, 1
      %p83 = por %p81, %p82
      %p85 = scmp.ne.s32.totalorder %s70, %s84
      %p86 = scmp.eq.s32.totalorder %s25, 0
      %p87 = por %p85, %p86
      %s89 = sadd.s32 %s88, 1
      %p92 = scmp.eq.s32.totalorder %s19, 1
      %p93 = scmp.ne.s32.totalorder %s88, %s90
      %p94 = scmp.eq.s32.totalorder %s19, 0
      %p95 = por %p93, %p94
      %p96 = scmp.ne.s32.totalorder %s88, %s90
      %p97 = scmp.eq.s32.totalorder %s24, 1
      %p98 = por %p96, %p97
      %p99 = scmp.ne.s32.totalorder %s90, %s91
      %p100 = scmp.eq.s32.totalorder %s24, 0
      %p101 = por %p99, %p100
      %p102 = scmp.ne.s32.totalorder %s90, %s91
      %p103 = scmp.eq.s32.totalorder %s25, 1
      %p104 = por %p102, %p103
      %p106 = scmp.ne.s32.totalorder %s91, %s105
      %p107 = scmp.eq.s32.totalorder %s25, 0
      %p108 = por %p106, %p107
      %s110 = sadd.s32 %s109, 1
      %p113 = scmp.eq.s32.totalorder %s19, 1
      %p114 = scmp.ne.s32.totalorder %s109, %s111
      %p115 = scmp.eq.s32.totalorder %s19, 0
      %p116 = por %p114, %p115
      %p117 = scmp.ne.s32.totalorder %s109, %s111
      %p118 = scmp.eq.s32.totalorder %s24, 1
      %p119 = por %p117, %p118
      %p120 = scmp.ne.s32.totalorder %s111, %s112
      %p121 = scmp.eq.s32.totalorder %s24, 0
      %p122 = por %p120, %p121
      %p123 = scmp.ne.s32.totalorder %s111, %s112
      %p124 = scmp.eq.s32.totalorder %s25, 1
      %p125 = por %p123, %p124
      %p127 = scmp.ne.s32.totalorder %s112, %s126
      %p128 = scmp.eq.s32.totalorder %s25, 0
      %p129 = por %p127, %p128
      %s131 = sadd.s32 %s130, 1
      %p134 = scmp.eq.s32.totalorder %s19, 1
      %p135 = scmp.ne.s32.totalorder %s130, %s132
      %p136 = scmp.eq.s32.totalorder %s19, 0
      %p137 = por %p135, %p136
      %p138 = scmp.ne.s32.totalorder %s130, %s132
      %p139 = scmp.eq.s32.totalorder %s24, 1
      %p140 = por %p138, %p139
      %p141 = scmp.ne.s32.totalorder %s132, %s133
      %p142 = scmp.eq.s32.totalorder %s24, 0
      %p143 = por %p141, %p142
      %p144 = scmp.ne.s32.totalorder %s132, %s133
      %p145 = scmp.eq.s32.totalorder %s25, 1
      %p146 = por %p144, %p145
      %p148 = scmp.ne.s32.totalorder %s133, %s147
      %p149 = scmp.eq.s32.totalorder %s25, 0
      %p150 = por %p148, %p149
      %s151 = ssub.s32 %s26, %s38
      %s152 = ssub.s32 %s27, %s34
      %s153 = sor.u32 %s151, %s152
      %p154 = scmp.eq.s32.totalorder %s153, 0
      %s156 = sadd.s32 %s155, 1
      %s157 = scalar_select %p154, %s155, %s156
      %p160 = pneg %p154
      %p161 = scmp.eq.s32.totalorder %s19, 1
      %p162 = por %p160, %p161
      %p163 = scmp.ne.s32.totalorder %s155, %s158
      %p164 = scmp.eq.s32.totalorder %s19, 0
      %p165 = por %p163, %p164
      %p166 = scmp.ne.s32.totalorder %s155, %s158
      %p167 = scmp.eq.s32.totalorder %s24, 1
      %p168 = por %p166, %p167
      %p169 = scmp.ne.s32.totalorder %s158, %s159
      %p170 = scmp.eq.s32.totalorder %s24, 0
      %p171 = por %p169, %p170
      %p172 = scmp.ne.s32.totalorder %s158, %s159
      %p173 = scmp.eq.s32.totalorder %s25, 1
      %p174 = por %p172, %p173
      %p176 = scmp.ne.s32.totalorder %s159, %s175
      %p177 = scmp.eq.s32.totalorder %s25, 0
      %p178 = por %p176, %p177
      %s179 = ssub.s32 %s26, %s38
      %s180 = ssub.s32 %s27, %s34
      %s181 = sor.u32 %s179, %s180
      %p182 = scmp.eq.s32.totalorder %s181, 0
      %s184 = sadd.s32 %s183, 1
      %s185 = scalar_select %p182, %s183, %s184
      %p188 = pneg %p182
      %p189 = scmp.eq.s32.totalorder %s19, 1
      %p190 = por %p188, %p189
      %p191 = scmp.ne.s32.totalorder %s183, %s186
      %p192 = scmp.eq.s32.totalorder %s19, 0
      %p193 = por %p191, %p192
      %p194 = scmp.ne.s32.totalorder %s183, %s186
      %p195 = scmp.eq.s32.totalorder %s24, 1
      %p196 = por %p194, %p195
      %p197 = scmp.ne.s32.totalorder %s186, %s187
      %p198 = scmp.eq.s32.totalorder %s24, 0
      %p199 = por %p197, %p198
      %p200 = scmp.ne.s32.totalorder %s186, %s187
      %p201 = scmp.eq.s32.totalorder %s25, 1
      %p202 = por %p200, %p201
      %p204 = scmp.ne.s32.totalorder %s187, %s203
      %p205 = scmp.eq.s32.totalorder %s25, 0
      %p206 = por %p204, %p205
      %p207 = scmp.le.s32.totalorder 1, %s19
      %p208 = scmp.lt.s32.totalorder %s19, 3
      %p209 = pnand %p207, %p208
      %p210 = pneg %p209
      // Predicated region
      $region9: #{tpu_custom_call.1} parent=5 // pred_check
        _
      $region10: #{tpu_custom_call.1} parent=5 // pred_check_branch
        %212 = sbr.rel (%p209) target = $region12
      $region11: #{tpu_custom_call.1} parent=5 // pred_region
        %s213 = ssub.s32 %s19, 1
        // Predicated region
        $region13: #{tpu_custom_call.1} parent=11 // pred_check
          %p214 = pneg %p80
        $region14: #{tpu_custom_call.1} parent=11 // pred_check_branch
          %216 = sbr.rel (%p214) target = $region16
        $region15: #{tpu_custom_call.1} parent=11 // pred_region
          _
        $region16: #{tpu_custom_call.1} parent=11 // pred_fallthru
          _
        // Predicated region
        $region17: #{tpu_custom_call.1} parent=11 // pred_check
          %p217 = pneg %p101
        $region18: #{tpu_custom_call.1} parent=11 // pred_check_branch
          %219 = sbr.rel (%p217) target = $region20
        $region19: #{tpu_custom_call.1} parent=11 // pred_region
          _
        $region20: #{tpu_custom_call.1} parent=11 // pred_fallthru
          _
        // Predicated region
        $region21: #{tpu_custom_call.1} parent=11 // pred_check
          %p220 = pneg %p122
        $region22: #{tpu_custom_call.1} parent=11 // pred_check_branch
          %222 = sbr.rel (%p220) target = $region24
        $region23: #{tpu_custom_call.1} parent=11 // pred_region
          _
        $region24: #{tpu_custom_call.1} parent=11 // pred_fallthru
          _
        // Predicated region
        $region25: #{tpu_custom_call.1} parent=11 // pred_check
          %p223 = pneg %p143
        $region26: #{tpu_custom_call.1} parent=11 // pred_check_branch
          %225 = sbr.rel (%p223) target = $region28
        $region27: #{tpu_custom_call.1} parent=11 // pred_region
          _
        $region28: #{tpu_custom_call.1} parent=11 // pred_fallthru
          _
      $region12: #{tpu_custom_call.1} parent=5 // pred_fallthru
        _
      %p226 = scmp.lt.s32.totalorder %s19, 2
      // Predicated region
      $region29: #{tpu_custom_call.1} parent=5 // pred_check
        %p227 = pneg %p226
      $region30: #{tpu_custom_call.1} parent=5 // pred_check_branch
        %229 = sbr.rel (%p227) target = $region32
      $region31: #{tpu_custom_call.1} parent=5 // pred_region
        // Predicated region
        $region33: #{tpu_custom_call.1} parent=31 // pred_check
          %p230 = pneg %p53
        $region34: #{tpu_custom_call.1} parent=31 // pred_check_branch
          %232 = sbr.rel (%p230) target = $region36
        $region35: #{tpu_custom_call.1} parent=31 // pred_region
          %s233 = sand.u32 %s43, 1
          %s234 = scalar_lea.sflag [#allocation3], %s233
          %s235 = sand.u32 %s43, 1
          %s236 = smul.addr %s235, 64
          %s237 = scalar_lea.vmem [#allocation2], %s236
          %s238 = smul.u32 2, %s27
          %s240 = ssub.s32 1024, 1024
          %241 = vsyncadd %s234, %s240
          %s242 = smul.addr %s26, 8
          %s243 = sadd.s32 %s238, %s242
          %s244 = smul.addr %s243, 128
          %s245 = scalar_lea.hbm %s0, %s244
          %s246 = sshll.u32 %s237, 4
          %s247 = int_to_ptr.vmem [resolvable:$true] %s246
          %252 = dma.hbm_to_vmem [thread:$0]  %s245, 1024, %s247, %s234, 256, 256, 16
        $region36: #{tpu_custom_call.1} parent=31 // pred_fallthru
          _
      $region32: #{tpu_custom_call.1} parent=5 // pred_fallthru
        _
      %p253 = scmp.le.s32.totalorder 1, %s19
      %p254 = scmp.lt.s32.totalorder %s19, 3
      %p255 = pnand %p253, %p254
      %p256 = pneg %p255
      // Predicated region
      $region37: #{tpu_custom_call.1} parent=5 // pred_check
        _
      $region38: #{tpu_custom_call.1} parent=5 // pred_check_branch
        %258 = sbr.rel (%p255) target = $region40
      $region39: #{tpu_custom_call.1} parent=5 // pred_region
        %s259 = ssub.s32 %s19, 1
        %s260 = sand.u32 %s46, 1
        %s261 = scalar_lea.sflag [#allocation3], %s260
        %s262 = sand.u32 %s46, 1
        %s263 = smul.addr %s262, 64
        %s264 = scalar_lea.vmem [#allocation2], %s263
        // Predicated region
        $region41: #{tpu_custom_call.1} parent=39 // pred_check
          %p265 = pneg %p59
        $region42: #{tpu_custom_call.1} parent=39 // pred_check_branch
          %267 = sbr.rel (%p265) target = $region44
        $region43: #{tpu_custom_call.1} parent=39 // pred_region
          %268 = dma.done %s261, 1024
        $region44: #{tpu_custom_call.1} parent=39 // pred_fallthru
          _
        %s269 = sand.u32 %s46, 1
        %s270 = scalar_lea.sflag [#allocation3], %s269
        %s271 = sand.u32 %s46, 1
        %s272 = smul.addr %s271, 64
        %s273 = scalar_lea.vmem [#allocation2], %s272
        %p274 = pneg %p59
        %p275 = pneg %p56
        %p276 = pneg %p80
        %p277 = pneg %p77
        %p278 = pneg %p101
        %p279 = pneg %p98
        %p280 = pneg %p122
        %p281 = pneg %p119
        %p282 = pneg %p143
        %p283 = pneg %p140
        %p284 = pneg %p171
        %p285 = pneg %p168
        %s286 = sand.u32 %s158, 1
        %s287 = scalar_lea.sflag [#allocation4], %s286
        %s288 = sand.u32 %s158, 1
        %s289 = smul.addr %s288, 2
        %s290 = scalar_lea.vmem [#allocation5], %s289
        %p291 = pneg %p199
        %p292 = pneg %p196
        %s293 = smul.u32 2, %s29
        %p294 = scmp.lt.s32.totalorder %s28, 1
        %s295 = scalar_select %p294, %s28, 1
        %p296 = scmp.lt.s32.totalorder %s293, 1
        %s297 = scalar_select %p296, %s293, 1
        %s298 = smul.addr %s295, 2
        %s299 = sadd.s32 %s297, %s298
        %s300 = smul.addr %s299, 8
        %s301 = scalar_lea.vmem %s6, %s300
        %s302 = smul.u32 2, %s29
        %s303 = smul.u32 2, %s29
        %s304 = smul.u32 2, %s29
        %p305 = scmp.lt.s32.totalorder %s28, 1
        %s306 = scalar_select %p305, %s28, 1
        %p307 = scmp.lt.s32.totalorder %s304, 1
        %s308 = scalar_select %p307, %s304, 1
        %s309 = smul.addr %s306, 2
        %s310 = sadd.s32 %s308, %s309
        %s311 = smul.addr %s310, 8
        %s312 = scalar_lea.vmem %s6, %s311
        %s313 = smul.u32 2, %s29
        %v314 = vld [vmem:[%s264] sm:$0xff]
        %v315 = vld [vmem:[%s264 + $0x8] sm:$0xff]
        %v316 = vld [vmem:[%s264 + $0x10] sm:$0xff]
        %v317 = vld [vmem:[%s264 + $0x18] sm:$0xff]
        %v318 = vld [vmem:[%s264 + $0x20] sm:$0xff]
        %v319 = vld [vmem:[%s264 + $0x28] sm:$0xff]
        %v320 = vld [vmem:[%s264 + $0x30] sm:$0xff]
        %v321 = vld [vmem:[%s264 + $0x38] sm:$0xff]
        %v322 = vld [vmem:[%s1] sm:$0x3f]
        %v323 = vld [vmem:[%s2] sm:$0x3f]
        %325 = vset.pattern.permute.xlu0 0
        %326 = vperm.xlu0 %325, %v323
        %v327 = vpop.permute.xlu0 %326
        %vm329 = vcmask 261120
        %v331 = vsel %vm329, %v322, 0
        %333 = vmatprep.subr.mxu0 0.0
        %334 = vmatpush1.msra.mxu0 0.0
        %335 = vmatprep.subr.mxu0 0.0
        %336 = vmatpush1.msra.mxu0 0.0
        %337 = vmatprep.subr.mxu0 0.0
        %338 = vmatpush1.msra.mxu0 0.0
        %339 = vmatprep.subr.mxu0 0.0
        %340 = vmatpush1.msra.mxu0 0.0
        %341 = vmatprep.subr.mxu0 0.0
        %342 = vmatpush1.msra.mxu0 0.0
        %343 = vmatprep.subr.mxu0 0.0
        %344 = vmatpush1.msra.mxu0 0.0
        %345 = vmatprep.subr.mxu0 0.0
        %346 = vmatpush1.msra.mxu0 0.0
        %347 = vmatprep.subr.mxu0 0.0
        %348 = vmatpush1.msra.mxu0 0.0
        %349 = vmatprep.subr.mxu0 0.0
        %350 = vmatpush1.msra.mxu0 0.0
        %351 = vmatprep.subr.mxu0 0.0
        %352 = vmatpush1.msra.mxu0 0.0
        %353 = vmatprep.subr.mxu0 0.0
        %354 = vmatpush1.msra.mxu0 0.0
        %355 = vmatprep.subr.mxu0 0.0
        %356 = vmatpush1.msra.mxu0 0.0
        %357 = vmatprep.subr.mxu0 %v321
        %358 = vmatpush1.msra.mxu0 %v320
        %359 = vmatprep.subr.mxu0 %v319
        %360 = vmatpush1.msra.mxu0 %v318
        %361 = vmatprep.subr.mxu0 %v317
        %362 = vmatpush1.msra.mxu0 %v316
        %363 = vmatprep.subr.mxu0 %v315
        %364 = vmatpush1.msra.mxu0 %v314
        %365 = vmatprep.subr.mxu0 0.0
        %366 = vmatpush2.msra.mxu0 0.0
        %367 = vmatprep.subr.mxu0 0.0
        %368 = vmatpush2.msra.mxu0 0.0
        %369 = vmatprep.subr.mxu0 0.0
        %370 = vmatpush2.msra.mxu0 0.0
        %371 = vmatprep.subr.mxu0 0.0
        %372 = vmatpush2.msra.mxu0 0.0
        %373 = vmatprep.subr.mxu0 0.0
        %374 = vmatpush2.msra.mxu0 0.0
        %375 = vmatprep.subr.mxu0 0.0
        %376 = vmatpush2.msra.mxu0 0.0
        %377 = vmatprep.subr.mxu0 0.0
        %378 = vmatpush2.msra.mxu0 0.0
        %379 = vmatprep.subr.mxu0 0.0
        %380 = vmatpush2.msra.mxu0 0.0
        %381 = vmatprep.subr.mxu0 0.0
        %382 = vmatpush2.msra.mxu0 0.0
        %383 = vmatprep.subr.mxu0 0.0
        %384 = vmatpush2.msra.mxu0 0.0
        %385 = vmatprep.subr.mxu0 0.0
        %386 = vmatpush2.msra.mxu0 0.0
        %387 = vmatprep.subr.mxu0 0.0
        %388 = vmatpush2.msra.mxu0 0.0
        %389 = vmatprep.subr.mxu0 0.0
        %390 = vmatpush2.msra.mxu0 0.0
        %391 = vmatprep.subr.mxu0 0.0
        %392 = vmatpush2.msra.mxu0 0.0
        %393 = vmatprep.subr.mxu0 0.0
        %394 = vmatpush2.msra.mxu0 0.0
        %395 = vmatprep.subr.mxu0 0.0
        %396 = vmatpush2.msra.mxu0 0.0
        %397 = vmatprep.mubr.f32.mxu0 0.0
        %398 = vmatmul.mubr.f32.gmra.mxu0 %v331
        %v399 = vpop.f32.mrf.mxu0
        %v400 = vadd.f32 %v327, %v399
        %v401 = vpop.f32.mrf.mxu0
        %v402 = vadd.f32 %v327, %v401
        %403 = vdwg.mxu0
        %v404 = vxor.u32 %v400, 2147483648
        %v405 = vxor.u32 %v402, 2147483648
        %v406 = vmul.f32 %v404, 1.442695
        %v407 = vpow.pop %v406
        %v408 = vmul.f32 %v405, 1.442695
        %v409 = vpow.pop %v408
        %v410 = vadd.f32 %v407, 1.0
        %v411 = vadd.f32 %v409, 1.0
        %v412 = vrcp.pop %v410
        %v413 = vmul.f32 1.0, %v412
        %v414 = vrcp.pop %v411
        %v415 = vmul.f32 1.0, %v414
        %v416 = vld [vmem:[%s3] sm:$0x3f]
        %418 = vset.pattern.permute.xlu0 0
        %419 = vperm.xlu0 %418, %v416
        %v420 = vpop.permute.xlu0 %419
        %v422 = vmul.f32 %v413, %v420
        %v423 = vmul.f32 %v415, %v420
        %v424 = vld [vmem:[%s4] sm:$0x3f]
        %426 = vset.pattern.permute.xlu0 0
        %427 = vperm.xlu0 %426, %v424
        %v428 = vpop.permute.xlu0 %427
        %v430 = vadd.f32 %v422, %v428
        %v431 = vadd.f32 %v423, %v428
        %v434 = vcombine.low %v430, %v431
        %v436 = vunpack.c.l.s4 1966171168
        %v437 = vunpack.c.0.s8 %v436
        %v438 = vlaneseq
        %v439 = vshrl.u32 %v438, 7
        %v440 = vsub.s32 %v437, %v439
        %v441 = vrot.slane %v434, %v440
        %v443 = vunpack.c.l.s4 1966171168
        %v444 = vunpack.c.0.s8 %v443
        %v445 = vlaneseq
        %v446 = vshrl.u32 %v445, 7
        %v447 = vsub.s32 %v444, %v446
        %v448 = vrot.slane %v441, %v447
        %v450 = vlaneseq
        %vm451 = vcmp.ge.s32.totalorder %v450, 0
        %vm452 = vcmp.lt.s32.totalorder %v450, 256
        %vm453 = vmand %vm451, %vm452
        %454 = vst.msk [vmem:[%s290] sm:$0x3] %vm453, %v448
        %v455 = vrot.slane %v430, 1
        %v456 = vrot.slane %v431, 1
        %459 = vst [vmem:[%s312] sm:$0x1f] %v455
        %460 = vst [vmem:[%s312 + $0x8] sm:$0x1f] %v456
        %s461 = sand.u32 %s158, 1
        %s462 = scalar_lea.sflag [#allocation4], %s461
        %s463 = sand.u32 %s158, 1
        %s464 = smul.addr %s463, 2
        %s465 = scalar_lea.vmem [#allocation5], %s464
        %s466 = smul.u32 2, %s29
        %p467 = scmp.lt.s32.totalorder %s28, 1
        %s468 = scalar_select %p467, %s28, 1
        %p469 = scmp.lt.s32.totalorder %s466, 1
        %s470 = scalar_select %p469, %s466, 1
        %s471 = smul.addr %s468, 2
        %s472 = sadd.s32 %s470, %s471
        %s473 = smul.addr %s472, 8
        %s474 = scalar_lea.vmem %s6, %s473
        // Predicated region
        $region45: #{tpu_custom_call.1} parent=39 // pred_check
          %p475 = pneg %p168
        $region46: #{tpu_custom_call.1} parent=39 // pred_check_branch
          %477 = sbr.rel (%p475) target = $region48
        $region47: #{tpu_custom_call.1} parent=39 // pred_region
          %s478 = smul.u32 2, %s29
          %s480 = ssub.s32 32, 32
          %481 = vsyncadd %s462, %s480
          %s482 = smul.addr %s28, 2
          %s483 = sadd.s32 %s478, %s482
          %s484 = smul.addr %s483, 16
          %s485 = scalar_lea.hbm %s5, %s484
          %s487 = sshll.u32 %s465, 4
          %s488 = int_to_ptr.vmem [resolvable:$true] %s487
          %490 = dma.vmem_to_hbm [thread:$0]  %s488, 32, %s485, %s462
        $region48: #{tpu_custom_call.1} parent=39 // pred_fallthru
          _
        // Predicated region
        $region49: #{tpu_custom_call.1} parent=39 // pred_check
          %p491 = pneg %p196
        $region50: #{tpu_custom_call.1} parent=39 // pred_check_branch
          %493 = sbr.rel (%p491) target = $region52
        $region51: #{tpu_custom_call.1} parent=39 // pred_region
          %s494 = smul.u32 2, %s29
        $region52: #{tpu_custom_call.1} parent=39 // pred_fallthru
          _
      $region40: #{tpu_custom_call.1} parent=5 // pred_fallthru
        _
      %p495 = scmp.le.s32.totalorder 2, %s19
      // Predicated region
      $region53: #{tpu_custom_call.1} parent=5 // pred_check
        %p496 = pneg %p495
      $region54: #{tpu_custom_call.1} parent=5 // pred_check_branch
        %498 = sbr.rel (%p496) target = $region56
      $region55: #{tpu_custom_call.1} parent=5 // pred_region
        %s499 = ssub.s32 %s19, 2
        // Predicated region
        $region57: #{tpu_custom_call.1} parent=55 // pred_check
          %p500 = pneg %p174
        $region58: #{tpu_custom_call.1} parent=55 // pred_check_branch
          %502 = sbr.rel (%p500) target = $region60
        $region59: #{tpu_custom_call.1} parent=55 // pred_region
          %s503 = sand.u32 %s159, 1
          %s504 = scalar_lea.sflag [#allocation4], %s503
          %s505 = sand.u32 %s159, 1
          %s506 = smul.addr %s505, 2
          %s507 = scalar_lea.vmem [#allocation5], %s506
          %508 = dma.done %s504, 32
        $region60: #{tpu_custom_call.1} parent=55 // pred_fallthru
          _
        // Predicated region
        $region61: #{tpu_custom_call.1} parent=55 // pred_check
          %p509 = pneg %p202
        $region62: #{tpu_custom_call.1} parent=55 // pred_check_branch
          %511 = sbr.rel (%p509) target = $region64
        $region63: #{tpu_custom_call.1} parent=55 // pred_region
          %s512 = smul.u32 2, %s31
          %p513 = scmp.lt.s32.totalorder %s30, 1
          %s514 = scalar_select %p513, %s30, 1
          %p515 = scmp.lt.s32.totalorder %s512, 1
          %s516 = scalar_select %p515, %s512, 1
          %s517 = smul.addr %s514, 2
          %s518 = sadd.s32 %s516, %s517
          %s519 = smul.addr %s518, 8
          %s520 = scalar_lea.vmem %s6, %s519
        $region64: #{tpu_custom_call.1} parent=55 // pred_fallthru
          _
      $region56: #{tpu_custom_call.1} parent=5 // pred_fallthru
        _
    $region6: #{tpu_custom_call.1} parent=1 // loop_footer
      %s23 = sadd.s32 1, %s19
    $region7: #{tpu_custom_call.1} parent=1 // loop_footer_branch
      %18 = sbr.rel target = $region3
    $region8: #{tpu_custom_call.1} parent=1 // loop_exit
      _
    %521 = vsyncpa [#allocation3], 1
    %s522 = scalar_lea.sflag [#allocation3], 1
    %523 = vsyncpa %s522, 1
    %524 = vsyncpa [#allocation4], 1
    %s525 = scalar_lea.sflag [#allocation4], 1
    %526 = vsyncpa %s525, 1

</llo_original>
